<compile_context>
chip_gen: v6e
topology: v6e:2x2x1
jax: 0.10.0
libtpu: 0.0.40
codegen_flags: <defaults>
</compile_context>

<pallas_src>
import functools

import jax
import jax.numpy as jnp
from jax.experimental import pallas as pl
from jax.experimental.pallas import tpu as pltpu


def additive_attention_kernel(enc_ref, ua_ref, w_ref, v_ref, ctx_ref, attn_ref,
                              *, approx_recip, bf16_energy):
    bt, s, d = enc_ref.shape
    h = w_ref.shape[1]

    enc = enc_ref[...]                                   # (Bt, S, D), f32 or bf16
    enc2d = enc.reshape(bt * s, d)                       # layout-preserving merge

    # Wa = enc @ W^T : one (Bt*S, D)@(D, H) MXU matmul per grid step, f32 acc.
    # (b_W is folded into ua in the wrapper, so no bias add here.)
    wa = jnp.dot(enc2d, w_ref[...],
                 preferred_element_type=jnp.float32).reshape(bt, s, h)

    ua = ua_ref[...][:, None, :]                         # (Bt, 1, H) f32, b_U + b_W folded
    if bf16_energy:
        # v6e/v7x lever once HBM traffic is halved: tanh chain in bf16 on the
        # VPU/EUP; softmax max/exp/sum and accumulations stay f32.
        energy = jnp.tanh((wa + ua).astype(jnp.bfloat16))
        score = jnp.sum(energy * v_ref[...].astype(jnp.bfloat16),
                        axis=-1, dtype=jnp.float32)      # (Bt, S)
    else:
        energy = jnp.tanh(wa + ua)                       # (Bt, S, H) f32 VPU/EUP
        # score = energy @ V^T as a VPU multiply + lane reduce over H.
        # b_V is a constant shift and cancels exactly in the softmax -> dropped.
        score = jnp.sum(energy * v_ref[...], axis=-1)    # (Bt, S), S on lanes

    # softmax over the sequence axis (lane reduce); reciprocal on the EUP slot.
    m = jnp.max(score, axis=-1, keepdims=True)
    e = jnp.exp(score - m)
    denom = jnp.sum(e, axis=-1, keepdims=True)
    attn = e * pl.reciprocal(denom, approx=approx_recip)  # (Bt, S)

    # context: VPU broadcast-multiply + axis=1 (sublane/XLU) reduce. Avoids Bt
    # tiny M=1 MXU matmuls that serialize on the MXU result FIFO (v5e/v6e).
    ctx = jnp.sum(attn[:, :, None] * enc.astype(jnp.float32), axis=1)  # (Bt, D)

    ctx_ref[...] = ctx.astype(ctx_ref.dtype)
    attn_ref[...] = attn.astype(attn_ref.dtype)           # lane-dense (Bt, S)


def _vmem_budget():
    """Returns (block-sizing budget, vmem_limit_bytes) from the local chip's
    physical VMEM (128 MiB on v5e/v6e, 64 MiB per-core on v7x). Falls back to a
    conservative 64 MiB if the query is unavailable."""
    cap = 64 * 1024 * 1024
    try:
        cap = int(pltpu.get_tpu_info().vmem_capacity_bytes)
    except Exception:
        pass
    vmem_limit = min((cap * 3) // 4, 100 * 1024 * 1024)   # ~96 MiB v5e/v6e, ~48 MiB v7x
    return int(vmem_limit * 0.85), int(vmem_limit)         # headroom for compiler temps


def _working_set_bytes(bt, S, D, H, enc_bytes, w_bytes):
    enc_blk = 2 * bt * S * D * enc_bytes       # double-buffered streaming input
    ua_blk = 2 * bt * H * 4
    w_buf = 2 * D * H * w_bytes                # grid-invariant, still double-buffered
    v_buf = 2 * H * 4                          # TODO(synk): pl.Buffered(1) on W/V would free one copy
    outs = 2 * bt * (D + S) * 4                # ctx + attn output blocks
    interm = 2 * bt * S * H * 4                # wa / energy live set (approx)
    return enc_blk + ua_blk + w_buf + v_buf + outs + interm


def _choose_batch_block(B, S, D, H, enc_bytes, w_bytes, vmem_budget,
                        target_rows=2048):
    """Pick (padded_B, block_b): feed the MXU ~1-2K rows per grid step, shrink
    (by 8s, to keep the sublane rule) until the double-buffered working set
    fits the per-chip VMEM budget, and pad B up to a multiple of the block
    instead of ever falling back to a single oversized block."""
    def fits(bt):
        return _working_set_bytes(bt, S, D, H, enc_bytes, w_bytes) <= vmem_budget

    bt = max(8, (max(1, target_rows // max(S, 1)) // 8) * 8)
    while bt > 8 and not fits(bt):
        bt -= 8
    if B <= bt:
        return B, B           # whole batch in one block (full-dim block is legal)
    b_pad = ((B + bt - 1) // bt) * bt
    return b_pad, bt


def additive_attention(encoder_outputs, prev_hidden_state,
                       w_t, b_w, u_t, b_u, v_t, b_v,
                       *, block_b=None, use_bf16=True, bf16_energy=False):
    """encoder_outputs: (B, S, D); prev_hidden_state: (layers*dirs, B, H) torch-style.
    Linear weights pre-transposed as [in, out]. Returns
    (context (B, D), attention_weights (B, S, 1))."""
    del b_v  # constant shift on the scores; cancels exactly in the softmax
    B, S, D = encoder_outputs.shape
    H = w_t.shape[1]

    stream_dtype = jnp.bfloat16 if use_bf16 else jnp.float32
    stream_bytes = 2 if use_bf16 else 4

    # Glue: permute(1,0,2).view(B, -1) and the hoisted Ua = U(prev) matvec.
    # b_W and b_U are both broadcast-added before the tanh -> fold both into Ua.
    prev = jnp.transpose(prev_hidden_state, (1, 0, 2)).reshape(B, -1)
    ua = (prev @ u_t + b_u + b_w).astype(jnp.float32)                 # (B, H)

    v_row = v_t.reshape(1, H).astype(jnp.float32)                     # V^T lane row
    w_mxu = w_t.astype(stream_dtype)
    enc_in = encoder_outputs.astype(stream_dtype)   # halve the dominant HBM stream

    vmem_budget, vmem_limit = _vmem_budget()
    if block_b is None:
        b_pad, block_b = _choose_batch_block(B, S, D, H, stream_bytes,
                                             stream_bytes, vmem_budget)
    else:
        b_pad = -(-B // block_b) * block_b
    assert block_b == b_pad or block_b % 8 == 0

    if b_pad != B:
        # Padded rows see zero enc / zero ua -> finite outputs; sliced off below.
        enc_in = jnp.pad(enc_in, ((0, b_pad - B), (0, 0), (0, 0)))
        ua = jnp.pad(ua, ((0, b_pad - B), (0, 0)))

    grid = (b_pad // block_b,)

    kernel = functools.partial(additive_attention_kernel,
                               approx_recip=use_bf16, bf16_energy=bf16_energy)

    out_shape = (
        jax.ShapeDtypeStruct((b_pad, D), jnp.float32),   # context
        jax.ShapeDtypeStruct((b_pad, S), jnp.float32),   # attention (lane-dense)
    )

    grid_spec = pltpu.PrefetchScalarGridSpec(
        num_scalar_prefetch=0,
        grid=grid,
        in_specs=[
            pl.BlockSpec((block_b, S, D), lambda b: (b, 0, 0)),  # encoder_outputs
            pl.BlockSpec((block_b, H), lambda b: (b, 0)),        # Ua (+ b_U + b_W)
            pl.BlockSpec((D, H), lambda b: (0, 0)),              # W^T (grid-invariant)
            pl.BlockSpec((1, H), lambda b: (0, 0)),              # V^T row
        ],
        out_specs=[
            pl.BlockSpec((block_b, D), lambda b: (b, 0)),        # context
            pl.BlockSpec((block_b, S), lambda b: (b, 0)),        # attention
        ],
    )

    ctx, attn = pl.pallas_call(
        kernel,
        out_shape=out_shape,
        grid_spec=grid_spec,
        compiler_params=pltpu.CompilerParams(
            dimension_semantics=("parallel",),   # batch steps shard across TCs on v7x
            vmem_limit_bytes=vmem_limit,
        ),
    )(enc_in, ua, w_mxu, v_row)

    if b_pad != B:
        ctx, attn = ctx[:B], attn[:B]
    return ctx, attn.reshape(B, S, 1)                    # match module output shape


def reference(encoder_outputs, prev_hidden_state, w_t, b_w, u_t, b_u, v_t, b_v):
    B = encoder_outputs.shape[0]
    prev = jnp.transpose(prev_hidden_state, (1, 0, 2)).reshape(B, -1)
    wa = encoder_outputs @ w_t + b_w                 # (B, S, H)
    ua = (prev @ u_t + b_u)[:, None, :]              # (B, 1, H)
    energy = jnp.tanh(wa + ua)
    score = energy @ v_t + b_v                       # (B, S, 1)
    attn = jax.nn.softmax(score, axis=1)
    ctx = jnp.sum(attn * encoder_outputs, axis=1)    # (B, D)
    return ctx, attn


def linear_init(key, fan_in, fan_out):
    # mimic torch.nn.Linear default uniform(-1/sqrt(fan_in), 1/sqrt(fan_in))
    kw, kb = jax.random.split(key)
    bound = 1.0 / jnp.sqrt(jnp.float32(fan_in))
    w_t = jax.random.uniform(kw, (fan_in, fan_out), jnp.float32, -bound, bound)
    b = jax.random.uniform(kb, (fan_out,), jnp.float32, -bound, bound)
    return w_t, b


if __name__ == "__main__":
    B, S, H = 2, 8, 32
    D = H  # non-bidirectional: input_dim == hidden_state_dim

    key = jax.random.PRNGKey(0)
    k_enc, k_prev, k_u, k_w, k_v = jax.random.split(key, 5)

    encoder_outputs = jax.random.normal(k_enc, (B, S, D), jnp.float32)
    prev_hidden_state = jax.random.normal(k_prev, (1, B, H), jnp.float32)  # (layers, B, H)

    u_t, b_u = linear_init(k_u, D, H)   # U: Linear(input_dim, hidden)
    w_t, b_w = linear_init(k_w, D, H)   # W: Linear(input_dim, hidden)
    v_t, b_v = linear_init(k_v, H, 1)   # V: Linear(hidden, 1)

    ctx_ref, attn_ref = reference(encoder_outputs, prev_hidden_state,
                                  w_t, b_w, u_t, b_u, v_t, b_v)

    # Exact f32 path (tight numerical check).
    ctx32, attn32 = additive_attention(encoder_outputs, prev_hidden_state,
                                       w_t, b_w, u_t, b_u, v_t, b_v,
                                       use_bf16=False)
    jax.block_until_ready((ctx32, attn32))
    assert ctx32.shape == (B, D) and attn32.shape == (B, S, 1)
    assert jnp.allclose(ctx32, ctx_ref, atol=1e-5, rtol=1e-5)
    assert jnp.allclose(attn32, attn_ref, atol=1e-5, rtol=1e-5)

    # Production path: bf16 enc/W HBM streaming + bf16 MXU operands, f32
    # accumulation and f32 softmax (looser tolerance for bf16 operands).
    ctx16, attn16 = additive_attention(encoder_outputs, prev_hidden_state,
                                       w_t, b_w, u_t, b_u, v_t, b_v,
                                       use_bf16=True)
    jax.block_until_ready((ctx16, attn16))
    assert ctx16.shape == (B, D) and attn16.shape == (B, S, 1)
    assert jnp.allclose(ctx16, ctx_ref, atol=2e-2, rtol=2e-2)
    assert jnp.allclose(attn16, attn_ref, atol=2e-2, rtol=2e-2)

    print("KERNEL_OK")
</pallas_src>

<mosaic_0001>
module attributes {stable_mosaic.version = 11 : i64} {
  func.func @additive_attention_kernel(%arg0: i32, %arg1: memref<2x8x32xf32, #tpu.memory_space<vmem>>, %arg2: memref<2x32xf32, #tpu.memory_space<vmem>>, %arg3: memref<32x32xf32, #tpu.memory_space<vmem>>, %arg4: memref<1x32xf32, #tpu.memory_space<vmem>>, %arg5: memref<2x32xf32, #tpu.memory_space<vmem>>, %arg6: memref<2x8xf32, #tpu.memory_space<vmem>>) attributes {dimension_semantics = [#tpu.dimension_semantics<parallel>], iteration_bounds = array<i64: 1>, scalar_prefetch = 0 : i64, scratch_operands = 0 : i64, tpu.core_type = #tpu.core_type<tc>, window_params = [{transform_indices = @transform_0, window_bounds = array<i64: 2, 8, 32>}, {transform_indices = @transform_1, window_bounds = array<i64: 2, 32>}, {pipeline_mode = #tpu.pipeline_mode<synchronous>, transform_indices = @transform_2, window_bounds = array<i64: 32, 32>}, {pipeline_mode = #tpu.pipeline_mode<synchronous>, transform_indices = @transform_3, window_bounds = array<i64: 1, 32>}, {transform_indices = @transform_4, window_bounds = array<i64: 2, 32>}, {transform_indices = @transform_5, window_bounds = array<i64: 2, 8>}]} {
    %c0 = arith.constant 0 : index
    %c0_0 = arith.constant 0 : index
    %c0_1 = arith.constant 0 : index
    %0 = vector.load %arg1[%c0, %c0_0, %c0_1] : memref<2x8x32xf32, #tpu.memory_space<vmem>>, vector<2x8x32xf32>
    %1 = vector.shape_cast %0 : vector<2x8x32xf32> to vector<16x32xf32>
    %c0_2 = arith.constant 0 : index
    %c0_3 = arith.constant 0 : index
    %2 = vector.load %arg3[%c0_2, %c0_3] : memref<32x32xf32, #tpu.memory_space<vmem>>, vector<32x32xf32>
    %cst = arith.constant dense<0.000000e+00> : vector<16x32xf32>
    %3 = tpu.matmul %1, %2, %cst {dimension_numbers = #tpu.dot_dimension_numbers<[1], [0], [0], [1], [0, 0, 1, 1], [], []>} : vector<16x32xf32>, vector<32x32xf32>, vector<16x32xf32> -> vector<16x32xf32>
    %4 = vector.shape_cast %3 : vector<16x32xf32> to vector<2x8x32xf32>
    %c0_4 = arith.constant 0 : index
    %c0_5 = arith.constant 0 : index
    %5 = vector.load %arg2[%c0_4, %c0_5] : memref<2x32xf32, #tpu.memory_space<vmem>>, vector<2x32xf32>
    %6 = vector.shape_cast %5 : vector<2x32xf32> to vector<2x1x32xf32>
    %7 = vector.broadcast %6 : vector<2x1x32xf32> to vector<2x8x32xf32>
    %8 = arith.addf %4, %7 : vector<2x8x32xf32>
    %9 = math.tanh %8 : vector<2x8x32xf32>
    %c0_6 = arith.constant 0 : index
    %c0_7 = arith.constant 0 : index
    %10 = vector.load %arg4[%c0_6, %c0_7] : memref<1x32xf32, #tpu.memory_space<vmem>>, vector<1x32xf32>
    %11 = vector.shape_cast %10 : vector<1x32xf32> to vector<1x1x32xf32>
    %12 = vector.broadcast %11 : vector<1x1x32xf32> to vector<2x8x32xf32>
    %13 = arith.mulf %9, %12 : vector<2x8x32xf32>
    %cst_8 = arith.constant dense<0.000000e+00> : vector<2x8xf32>
    %14 = vector.multi_reduction <add>, %13, %cst_8 [2] : vector<2x8x32xf32> to vector<2x8xf32>
    %cst_9 = arith.constant dense<0xFF800000> : vector<2xf32>
    %15 = vector.multi_reduction <maximumf>, %14, %cst_9 [1] : vector<2x8xf32> to vector<2xf32>
    %16 = vector.shape_cast %15 : vector<2xf32> to vector<2x1xf32>
    %17 = vector.broadcast %16 : vector<2x1xf32> to vector<2x8xf32>
    %18 = arith.subf %14, %17 : vector<2x8xf32>
    %19 = math.exp %18 : vector<2x8xf32>
    %cst_10 = arith.constant dense<0.000000e+00> : vector<2xf32>
    %20 = vector.multi_reduction <add>, %19, %cst_10 [1] : vector<2x8xf32> to vector<2xf32>
    %21 = vector.shape_cast %20 : vector<2xf32> to vector<2x1xf32>
    %22 = tpu.reciprocal %21 : vector<2x1xf32> -> vector<2x1xf32>
    %23 = vector.broadcast %22 : vector<2x1xf32> to vector<2x8xf32>
    %24 = arith.mulf %19, %23 : vector<2x8xf32>
    %25 = vector.shape_cast %24 : vector<2x8xf32> to vector<2x8x1xf32>
    %26 = vector.broadcast %25 : vector<2x8x1xf32> to vector<2x8x32xf32>
    %27 = arith.mulf %26, %0 : vector<2x8x32xf32>
    %cst_11 = arith.constant dense<0.000000e+00> : vector<2x32xf32>
    %28 = vector.multi_reduction <add>, %27, %cst_11 [1] : vector<2x8x32xf32> to vector<2x32xf32>
    %c0_12 = arith.constant 0 : index
    %c0_13 = arith.constant 0 : index
    %29 = vector.load %arg5[%c0_12, %c0_13] : memref<2x32xf32, #tpu.memory_space<vmem>>, vector<2x32xf32>
    tpu.vector_store %arg5[%c0_12, %c0_13], %28 {strides = array<i32>} : memref<2x32xf32, #tpu.memory_space<vmem>>, vector<2x32xf32>,
    %c0_14 = arith.constant 0 : index
    %c0_15 = arith.constant 0 : index
    %30 = vector.load %arg6[%c0_14, %c0_15] : memref<2x8xf32, #tpu.memory_space<vmem>>, vector<2x8xf32>
    tpu.vector_store %arg6[%c0_14, %c0_15], %24 {strides = array<i32>} : memref<2x8xf32, #tpu.memory_space<vmem>>, vector<2x8xf32>,
    return
  }
  func.func @transform_0(%arg0: i32) -> (i32, i32, i32) {
    %c0_i32 = arith.constant 0 : i32
    %c0_i32_0 = arith.constant 0 : i32
    %c0_i32_1 = arith.constant 0 : i32
    return %arg0, %c0_i32, %c0_i32_0 : i32, i32, i32
  }
  func.func @transform_1(%arg0: i32) -> (i32, i32) {
    %c0_i32 = arith.constant 0 : i32
    %c0_i32_0 = arith.constant 0 : i32
    return %arg0, %c0_i32 : i32, i32
  }
  func.func @transform_2(%arg0: i32) -> (i32, i32) {
    %c0_i32 = arith.constant 0 : i32
    %c0_i32_0 = arith.constant 0 : i32
    %c0_i32_1 = arith.constant 0 : i32
    return %c0_i32, %c0_i32_0 : i32, i32
  }
  func.func @transform_3(%arg0: i32) -> (i32, i32) {
    %c0_i32 = arith.constant 0 : i32
    %c0_i32_0 = arith.constant 0 : i32
    %c0_i32_1 = arith.constant 0 : i32
    return %c0_i32, %c0_i32_0 : i32, i32
  }
  func.func @transform_4(%arg0: i32) -> (i32, i32) {
    %c0_i32 = arith.constant 0 : i32
    %c0_i32_0 = arith.constant 0 : i32
    return %arg0, %c0_i32 : i32, i32
  }
  func.func @transform_5(%arg0: i32) -> (i32, i32) {
    %c0_i32 = arith.constant 0 : i32
    %c0_i32_0 = arith.constant 0 : i32
    return %arg0, %c0_i32 : i32, i32
  }
}

</mosaic_0001>

<llo_original>
// kernel: tpu_custom_call.1
$region0: #{tpu_custom_call.1}
  #allocation0 [shape = 'u32[]', space=smem, size = 0x4, offset = 0x4, fixed_abs, tag = 'smem constant byte address 0x4 - core index']
  #allocation1 [shape = 'u32[144,128]{1,0:T(1,128)}', space=vmem, size = 0x12000, scoped, tag = 'internal scratch']
  %s0 = inlined_call_operand.hbm [shape: f32[2,8,32], index: 0, kind: input, shape index: {}]
  %s1 = inlined_call_operand.hbm [shape: f32[2,32], index: 1, kind: input, shape index: {}]
  %s2 = inlined_call_operand.hbm [shape: f32[32,32], index: 2, kind: input, shape index: {}]
  %s3 = inlined_call_operand.vmem [shape: f32[1,32], index: 3, kind: input, shape index: {}]
  %s4 = inlined_call_operand.hbm [shape: f32[2,32], index: 4, kind: output, shape index: {0}]
  %s5 = inlined_call_operand.hbm [shape: f32[2,8], index: 5, kind: output, shape index: {1}]
  %6 = xla_tuple %s4, %s5
  %s7 = sld [smem:[#allocation0]]
  $region46: #{tpu_custom_call.1} parent=0
    _
  %s9 = ssub.s32 1, %s7
  %s10 = scalar_select 0, %s9, %s7
  $region1: #{tpu_custom_call.1} parent=0
    #allocation2 [shape = 'u8[8192]{0}', space=vmem, size = 0x2000, scoped, tag = 'input window, operand 0, single buffered']
    #allocation3 [shape = 's32[1]{0}', space=sflag, size = 0x4, scoped, tag = 'scoped memory for tpu_custom_call.1']
    #allocation4 [shape = 's32[1]{0}', space=sflag, size = 0x4, scoped, tag = 'scoped memory for tpu_custom_call.1']
    #allocation5 [shape = 'u8[1024]{0}', space=vmem, size = 0x400, scoped, tag = 'input window, operand 1, single buffered']
    #allocation6 [shape = 's32[1]{0}', space=sflag, size = 0x4, scoped, tag = 'scoped memory for tpu_custom_call.1']
    #allocation7 [shape = 'u8[16384]{0}', space=vmem, size = 0x4000, scoped, tag = 'input window, operand 2, single buffered']
    #allocation8 [shape = 'u8[1024]{0}', space=vmem, size = 0x400, scoped, tag = 'output window, operand 0, single buffered']
    #allocation9 [shape = 'u8[1024]{0}', space=vmem, size = 0x400, scoped, tag = 'output window, operand 1, single buffered']
    #allocation10 [shape = 's32[1]{0}', space=sflag, size = 0x4, scoped, tag = 'scoped memory for tpu_custom_call.1']
    %11 = vsyncpa [#allocation3], 0
    %12 = vsyncpa [#allocation6], 0
    %13 = vsyncpa [#allocation4], 0
    %14 = vsyncpa [#allocation10], 0
    // Predicated region
    $region2: #{tpu_custom_call.1} parent=1 // pred_check
      _
    $region3: #{tpu_custom_call.1} parent=1 // pred_check_branch
      %16 = sbr.rel (0) target = $region5
    $region4: #{tpu_custom_call.1} parent=1 // pred_region
      %s18 = ssub.s32 256, 256
      %19 = vsyncadd [#allocation3], %s18
      %s20 = sshll.u32 [#allocation2], 4
      %s21 = int_to_ptr.vmem [resolvable:$true] %s20
      %26 = dma.hbm_to_vmem [thread:$0]  %s0, 256, %s21, [#allocation3], 128, 128, 8
    $region5: #{tpu_custom_call.1} parent=1 // pred_fallthru
      _
    // Predicated region
    $region6: #{tpu_custom_call.1} parent=1 // pred_check
      _
    $region7: #{tpu_custom_call.1} parent=1 // pred_check_branch
      %28 = sbr.rel (0) target = $region9
    $region8: #{tpu_custom_call.1} parent=1 // pred_region
      %s30 = ssub.s32 32, 32
      %31 = vsyncadd [#allocation6], %s30
      %s33 = sshll.u32 [#allocation5], 4
      %s34 = int_to_ptr.vmem [resolvable:$true] %s33
      %36 = dma.hbm_to_vmem [thread:$0]  %s1, 32, %s34, [#allocation6]
    $region9: #{tpu_custom_call.1} parent=1 // pred_fallthru
      _
    // Predicated region
    $region10: #{tpu_custom_call.1} parent=1 // pred_check
      _
    $region11: #{tpu_custom_call.1} parent=1 // pred_check_branch
      %38 = sbr.rel (0) target = $region13
    $region12: #{tpu_custom_call.1} parent=1 // pred_region
      %s40 = ssub.s32 512, 512
      %41 = vsyncadd [#allocation6], %s40
      %s42 = sshll.u32 [#allocation7], 4
      %s43 = int_to_ptr.vmem [resolvable:$true] %s42
      %48 = dma.hbm_to_vmem [thread:$0]  %s2, 512, %s43, [#allocation6], 128, 128, 8
    $region13: #{tpu_custom_call.1} parent=1 // pred_fallthru
      _
    // Predicated region
    $region14: #{tpu_custom_call.1} parent=1 // pred_check
      _
    $region15: #{tpu_custom_call.1} parent=1 // pred_check_branch
      %50 = sbr.rel (0) target = $region17
    $region16: #{tpu_custom_call.1} parent=1 // pred_region
      _
    $region17: #{tpu_custom_call.1} parent=1 // pred_fallthru
      _
    // Predicated region
    $region18: #{tpu_custom_call.1} parent=1 // pred_check
      _
    $region19: #{tpu_custom_call.1} parent=1 // pred_check_branch
      %52 = sbr.rel (0) target = $region21
    $region20: #{tpu_custom_call.1} parent=1 // pred_region
      %53 = dma.done [#allocation3], 256
    $region21: #{tpu_custom_call.1} parent=1 // pred_fallthru
      _
    // Predicated region
    $region22: #{tpu_custom_call.1} parent=1 // pred_check
      _
    $region23: #{tpu_custom_call.1} parent=1 // pred_check_branch
      %55 = sbr.rel (0) target = $region25
    $region24: #{tpu_custom_call.1} parent=1 // pred_region
      %56 = dma.done [#allocation6], 32
    $region25: #{tpu_custom_call.1} parent=1 // pred_fallthru
      _
    // Predicated region
    $region26: #{tpu_custom_call.1} parent=1 // pred_check
      _
    $region27: #{tpu_custom_call.1} parent=1 // pred_check_branch
      %58 = sbr.rel (0) target = $region29
    $region28: #{tpu_custom_call.1} parent=1 // pred_region
      %59 = dma.done [#allocation6], 512
    $region29: #{tpu_custom_call.1} parent=1 // pred_fallthru
      _
    %v60 = vld [vmem:[#allocation2] sm:$0xff]
    %v61 = vld [vmem:[#allocation2 + $0x8] sm:$0xff]
    %v62 = vld [vmem:[#allocation7] sm:$0xff]
    %v63 = vld [vmem:[#allocation7 + $0x8] sm:$0xff]
    %v64 = vld [vmem:[#allocation7 + $0x10] sm:$0xff]
    %v65 = vld [vmem:[#allocation7 + $0x18] sm:$0xff]
    %vm66 = vcmask 261120
    %v68 = vsel %vm66, %v60, 0
    %v71 = vsel %vm66, %v61, 0
    %73 = vmatprep.subr.mxu0 0.0
    %74 = vmatpush1.msra.mxu0 0.0
    %75 = vmatprep.subr.mxu0 0.0
    %76 = vmatpush1.msra.mxu0 0.0
    %77 = vmatprep.subr.mxu0 0.0
    %78 = vmatpush1.msra.mxu0 0.0
    %79 = vmatprep.subr.mxu0 0.0
    %80 = vmatpush1.msra.mxu0 0.0
    %81 = vmatprep.subr.mxu0 0.0
    %82 = vmatpush1.msra.mxu0 0.0
    %83 = vmatprep.subr.mxu0 0.0
    %84 = vmatpush1.msra.mxu0 0.0
    %85 = vmatprep.subr.mxu0 0.0
    %86 = vmatpush1.msra.mxu0 0.0
    %87 = vmatprep.subr.mxu0 0.0
    %88 = vmatpush1.msra.mxu0 0.0
    %89 = vmatprep.subr.mxu0 0.0
    %90 = vmatpush1.msra.mxu0 0.0
    %91 = vmatprep.subr.mxu0 0.0
    %92 = vmatpush1.msra.mxu0 0.0
    %93 = vmatprep.subr.mxu0 0.0
    %94 = vmatpush1.msra.mxu0 0.0
    %95 = vmatprep.subr.mxu0 0.0
    %96 = vmatpush1.msra.mxu0 0.0
    %97 = vmatprep.subr.mxu0 0.0
    %98 = vmatpush1.msra.mxu0 %v65
    %99 = vmatprep.subr.mxu0 0.0
    %100 = vmatpush1.msra.mxu0 %v64
    %101 = vmatprep.subr.mxu0 0.0
    %102 = vmatpush1.msra.mxu0 %v63
    %103 = vmatprep.subr.mxu0 0.0
    %104 = vmatpush1.msra.mxu0 %v62
    %105 = vmatprep.subr.mxu0 0.0
    %106 = vmatpush2.msra.mxu0 0.0
    %107 = vmatprep.subr.mxu0 0.0
    %108 = vmatpush2.msra.mxu0 0.0
    %109 = vmatprep.subr.mxu0 0.0
    %110 = vmatpush2.msra.mxu0 0.0
    %111 = vmatprep.subr.mxu0 0.0
    %112 = vmatpush2.msra.mxu0 0.0
    %113 = vmatprep.subr.mxu0 0.0
    %114 = vmatpush2.msra.mxu0 0.0
    %115 = vmatprep.subr.mxu0 0.0
    %116 = vmatpush2.msra.mxu0 0.0
    %117 = vmatprep.subr.mxu0 0.0
    %118 = vmatpush2.msra.mxu0 0.0
    %119 = vmatprep.subr.mxu0 0.0
    %120 = vmatpush2.msra.mxu0 0.0
    %121 = vmatprep.subr.mxu0 0.0
    %122 = vmatpush2.msra.mxu0 0.0
    %123 = vmatprep.subr.mxu0 0.0
    %124 = vmatpush2.msra.mxu0 0.0
    %125 = vmatprep.subr.mxu0 0.0
    %126 = vmatpush2.msra.mxu0 0.0
    %127 = vmatprep.subr.mxu0 0.0
    %128 = vmatpush2.msra.mxu0 0.0
    %129 = vmatprep.subr.mxu0 0.0
    %130 = vmatpush2.msra.mxu0 0.0
    %131 = vmatprep.subr.mxu0 0.0
    %132 = vmatpush2.msra.mxu0 0.0
    %133 = vmatprep.subr.mxu0 0.0
    %134 = vmatpush2.msra.mxu0 0.0
    %135 = vmatprep.subr.mxu0 0.0
    %136 = vmatpush2.msra.mxu0 0.0
    %137 = vmatprep.mubr.f32.mxu0 0.0
    %138 = vmatmul.mubr.f32.gmra.mxu0 %v68
    %v139 = vpop.f32.mrf.mxu0
    %v140 = vadd.f32 0.0, %v139
    %v141 = vpop.f32.mrf.mxu0
    %142 = vmatprep.mubr.f32.mxu0 0.0
    %143 = vmatmul.mubr.f32.gmra.mxu0 %v71
    %v144 = vpop.f32.mrf.mxu0
    %v145 = vadd.f32 0.0, %v144
    %v146 = vpop.f32.mrf.mxu0
    %147 = vdwg.mxu0
    %v148 = vld [vmem:[#allocation5] sm:$0x3]
    %v151 = vunpack.c.l.s4 1966171168
    %v152 = vunpack.c.0.s8 %v151
    %v153 = vlaneseq
    %v154 = vshrl.u32 %v153, 7
    %v155 = vsub.s32 %v152, %v154
    %v156 = vrot.slane %v148, %v155
    %v157 = vcombine.high %v156, %v156
    %v159 = vunpack.c.l.s4 1966171168
    %v160 = vunpack.c.0.s8 %v159
    %v161 = vlaneseq
    %v162 = vshrl.u32 %v161, 7
    %v163 = vsub.s32 %v160, %v162
    %v164 = vrot.slane %v156, %v163
    %v166 = vunpack.c.l.s4 1966171168
    %v167 = vunpack.c.0.s8 %v166
    %v168 = vlaneseq
    %v169 = vshrl.u32 %v168, 7
    %v170 = vsub.s32 %v167, %v169
    %v171 = vrot.slane %v157, %v170
    %v172 = vlaneseq
    %v173 = vshrl.u32 %v172, 7
    %v174 = vsub.s32 0, %v173
    %v175 = vrot.slane %v164, %v174
    %v176 = vlaneseq
    %v177 = vshrl.u32 %v176, 7
    %v178 = vsub.s32 0, %v177
    %v179 = vrot.slane %v171, %v178
    %v182 = vadd.f32 %v140, %v175
    %v183 = vadd.f32 %v145, %v179
    %v184 = vtanh.pop %v182
    %v185 = vtanh.pop %v183
    %v186 = vld [vmem:[%s3] sm:$0x1]
    %v188 = vlaneseq
    %v189 = vshrl.u32 %v188, 7
    %v190 = vsub.s32 0, %v189
    %v191 = vrot.slane %v186, %v190
    %v193 = vmul.f32 %v184, %v191
    %v194 = vmul.f32 %v185, %v191
    %v195 = vsel %vm66, %v193, 0.0
    %196 = vadd.xlane.f32.xlu0 %v195
    %v197 = vpop.xlane.xlu0 %196
    %v198 = vsel %vm66, %v194, 0.0
    %199 = vadd.xlane.f32.xlu0 %v198
    %v200 = vpop.xlane.xlu0 %199
    %v203 = vlaneseq
    %v204 = vand.u32 %v203, 127
    %v205 = vlaneseq
    %v206 = vshrl.u32 %v205, 7
    %v207 = vsub.s32 %v204, %v206
    %v208 = vrot.slane %v197, %v207
    %v209 = vlaneseq
    %v210 = vshrl.u32 %v209, 7
    %v211 = vsub.s32 %v204, %v210
    %v212 = vrot.slane %v200, %v211
    %vm213 = vcmask 1041409
    %v214 = vsel %vm213, %v212, %v208
    %vm216 = vcmask 58368
    %v217 = vsel %vm216, %v214, -inf
    %218 = vmax.xlane.f32.xlu0 %v217
    %v219 = vpop.xlane.xlu0 %218
    %v221 = vlaneseq
    %v222 = vshrl.u32 %v221, 7
    %v223 = vsub.s32 0, %v222
    %v224 = vrot.slane %v219, %v223
    %v225 = vlaneseq
    %v226 = vshrl.u32 %v225, 7
    %v227 = vsub.s32 1, %v226
    %v228 = vrot.slane %v219, %v227
    %v231 = vsub.f32 %v197, %v224
    %v232 = vsub.f32 %v200, %v228
    %v233 = vmul.f32 %v231, 1.442695
    %v234 = vpow.pop %v233
    %v235 = vmul.f32 %v232, 1.442695
    %v236 = vpow.pop %v235
    %239 = vset.pattern.permute.xlu0 0
    %240 = vperm.xlu0 %239, %v234
    %v241 = vpop.permute.xlu0 %240
    %242 = vset.pattern.permute.xlu0 0
    %243 = vperm.xlu0 %242, %v236
    %v244 = vpop.permute.xlu0 %243
    %v245 = vlaneseq
    %v246 = vshrl.u32 %v245, 7
    %v247 = vsub.s32 %v204, %v246
    %v248 = vrot.slane %v241, %v247
    %v249 = vlaneseq
    %v250 = vshrl.u32 %v249, 7
    %v251 = vsub.s32 %v204, %v250
    %v252 = vrot.slane %v244, %v251
    %v253 = vsel %vm213, %v252, %v248
    %v255 = vsel %vm216, %v253, 0.0
    %256 = vadd.xlane.f32.xlu0 %v255
    %v257 = vpop.xlane.xlu0 %256
    %v258 = vrcp.pop %v257
    %v260 = vlaneseq
    %v261 = vshrl.u32 %v260, 7
    %v262 = vsub.s32 0, %v261
    %v263 = vrot.slane %v258, %v262
    %v264 = vlaneseq
    %v265 = vshrl.u32 %v264, 7
    %v266 = vsub.s32 1, %v265
    %v267 = vrot.slane %v258, %v266
    %v270 = vmul.f32 %v234, %v263
    %v271 = vmul.f32 %v236, %v267
    %273 = vset.pattern.permute.xlu0 0
    %274 = vperm.xlu0 %273, %v270
    %v275 = vpop.permute.xlu0 %274
    %278 = vset.pattern.permute.xlu0 0
    %279 = vperm.xlu0 %278, %v271
    %v280 = vpop.permute.xlu0 %279
    %v282 = vmul.f32 %v275, %v60
    %v283 = vmul.f32 %v280, %v61
    %v284 = vsel %vm66, %v282, 0.0
    %v285 = vrot.slane %v284, 4
    %v286 = vadd.f32 %v284, %v285
    %v287 = vrot.slane %v286, 2
    %v288 = vadd.f32 %v286, %v287
    %v289 = vrot.slane %v288, 1
    %v290 = vadd.f32 %v288, %v289
    %v291 = vsel %vm66, %v283, 0.0
    %v292 = vrot.slane %v291, 4
    %v293 = vadd.f32 %v291, %v292
    %v294 = vrot.slane %v293, 2
    %v295 = vadd.f32 %v293, %v294
    %v296 = vrot.slane %v295, 1
    %v297 = vadd.f32 %v295, %v296
    %v300 = vsel %vm213, %v297, %v290
    %vm302 = vcmask 254976
    %303 = vst.msk [vmem:[#allocation8] sm:$0x3] %vm302, %v300
    %v304 = vlaneseq
    %v305 = vshrl.u32 %v304, 7
    %v306 = vsub.s32 %v204, %v305
    %v307 = vrot.slane %v275, %v306
    %v308 = vlaneseq
    %v309 = vshrl.u32 %v308, 7
    %v310 = vsub.s32 %v204, %v309
    %v311 = vrot.slane %v280, %v310
    %v312 = vsel %vm213, %v311, %v307
    %314 = vst.msk [vmem:[#allocation9] sm:$0x3] %vm216, %v312
    // Predicated region
    $region30: #{tpu_custom_call.1} parent=1 // pred_check
      _
    $region31: #{tpu_custom_call.1} parent=1 // pred_check_branch
      %316 = sbr.rel (0) target = $region33
    $region32: #{tpu_custom_call.1} parent=1 // pred_region
      %s318 = ssub.s32 32, 32
      %319 = vsyncadd [#allocation4], %s318
      %s321 = sshll.u32 [#allocation8], 4
      %s322 = int_to_ptr.vmem [resolvable:$true] %s321
      %324 = dma.vmem_to_hbm [thread:$0]  %s322, 32, %s4, [#allocation4]
    $region33: #{tpu_custom_call.1} parent=1 // pred_fallthru
      _
    // Predicated region
    $region34: #{tpu_custom_call.1} parent=1 // pred_check
      _
    $region35: #{tpu_custom_call.1} parent=1 // pred_check_branch
      %326 = sbr.rel (0) target = $region37
    $region36: #{tpu_custom_call.1} parent=1 // pred_region
      %s328 = ssub.s32 32, 32
      %329 = vsyncadd [#allocation10], %s328
      %s331 = sshll.u32 [#allocation9], 4
      %s332 = int_to_ptr.vmem [resolvable:$true] %s331
      %334 = dma.vmem_to_hbm [thread:$0]  %s332, 32, %s5, [#allocation10]
    $region37: #{tpu_custom_call.1} parent=1 // pred_fallthru
      _
    // Predicated region
    $region38: #{tpu_custom_call.1} parent=1 // pred_check
      _
    $region39: #{tpu_custom_call.1} parent=1 // pred_check_branch
      %336 = sbr.rel (0) target = $region41
    $region40: #{tpu_custom_call.1} parent=1 // pred_region
      %337 = dma.done [#allocation4], 32
    $region41: #{tpu_custom_call.1} parent=1 // pred_fallthru
      _
    // Predicated region
    $region42: #{tpu_custom_call.1} parent=1 // pred_check
      _
    $region43: #{tpu_custom_call.1} parent=1 // pred_check_branch
      %339 = sbr.rel (0) target = $region45
    $region44: #{tpu_custom_call.1} parent=1 // pred_region
      %340 = dma.done [#allocation10], 32
    $region45: #{tpu_custom_call.1} parent=1 // pred_fallthru
      _
    %341 = vsyncpa [#allocation3], 1
    %342 = vsyncpa [#allocation6], 1
    %343 = vsyncpa [#allocation4], 1
    %344 = vsyncpa [#allocation10], 1

</llo_original>
